<compile_context>
chip_gen: v6e
topology: v6e:2x2x1
jax: 0.10.0
libtpu: 0.0.40
codegen_flags: <defaults>
</compile_context>

<pallas_src>
import functools
import math

import jax
import jax.numpy as jnp
from jax.experimental import pallas as pl
from jax.experimental.pallas import tpu as pltpu

HIDDEN_PAD = 128   # every layer in/out padded to one 128-lane vreg width
OUT_PAD = 8        # final output padded 1 -> 8 lanes (small, legal writeback)


def _round_up(x, m):
    return ((x + m - 1) // m) * m


def mlp_kernel(x_ref, w_ref, b_ref, out_ref, *,
               in_dim, n_layers, n_sub, sub_rows):
    """Forward one (TB, in_dim) batch tile through all layers.

    x_ref  : (TB, in_dim)          bf16  streamed batch tile
    w_ref  : (n_layers, 128, 128)  bf16  zero-padded weight slab (VMEM-resident)
    b_ref  : (n_layers, 1, 128)    f32   zero-padded bias slab   (VMEM-resident)
    out_ref: (TB, OUT_PAD)         f32   lane 0 holds the real output

    The tile is split into `n_sub` independent sub-chunks of `sub_rows` rows,
    all in one basic block, so the scheduler can interleave MXU pushes of one
    sub-chunk with the bias/ReLU/cast VPU drain of another.
    """
    for s in range(n_sub):
        r0 = s * sub_rows
        h = x_ref[r0:r0 + sub_rows, :]                       # (sub, in_dim) bf16

        # Layer 0 contracts only the true `in_dim` rows of the padded slab.
        w0 = w_ref[0]                                        # (128, 128) bf16
        z = jnp.dot(h, w0[:in_dim, :], preferred_element_type=jnp.float32)
        h = jnp.maximum(z + b_ref[0], 0.0).astype(jnp.bfloat16)   # (sub, 128)

        # Hidden layers 1 .. n_layers-2: uniform 128x128 matmul + bias + ReLU.
        for l in range(1, n_layers - 1):
            z = jnp.dot(h, w_ref[l], preferred_element_type=jnp.float32)
            h = jnp.maximum(z + b_ref[l], 0.0).astype(jnp.bfloat16)

        # Final layer: no ReLU; only the first OUT_PAD lanes are written back.
        z = jnp.dot(h, w_ref[n_layers - 1], preferred_element_type=jnp.float32)
        z = z + b_ref[n_layers - 1]
        out_ref[r0:r0 + sub_rows, :] = z[:, :OUT_PAD].astype(out_ref.dtype)


def pack_params(params):
    """Pack per-layer (W, b) into zero-padded slabs.

    Orientation contract: W must be (in_features, out_features) -- i.e. the
    TRANSPOSE of torch.nn.Linear.weight -- and b is (1, out_features), so each
    layer computes x @ W + b (== torch's x @ weight.T + bias).
    """
    n_layers = len(params)
    w_slab = jnp.zeros((n_layers, HIDDEN_PAD, HIDDEN_PAD), jnp.float32)
    b_slab = jnp.zeros((n_layers, 1, HIDDEN_PAD), jnp.float32)
    for l, (w, b) in enumerate(params):
        fi, fo = w.shape
        assert fi <= HIDDEN_PAD and fo <= HIDDEN_PAD
        w_slab = w_slab.at[l, :fi, :fo].set(w)
        b_slab = b_slab.at[l, 0, :fo].set(b.reshape(-1))
    # bf16 weights (native MXU dtype, half the VMEM bytes), f32 biases.
    return w_slab.astype(jnp.bfloat16), b_slab


def neural_network_forward(x, w_slab, b_slab, *, block_batch=1024):
    """Run the packed MLP: x (B, in_dim) f32 -> (B, 1) f32."""
    B, in_dim = x.shape
    n_layers = w_slab.shape[0]
    assert in_dim <= HIDDEN_PAD

    # ---- batch tiling ----------------------------------------------------
    if B <= 256:
        TB = max(16, _round_up(B, 16))             # one tile, 16-row bf16 packing
    else:
        TB = min(block_batch, _round_up(B, 256))   # 256-aligned: full MXU passes
        if _round_up(B, TB) // TB < 2:
            # Ensure >= 2 parallel tiles so both v7x TensorCores get work.
            TB = max(256, _round_up(TB // 2, 256))
    B_pad = _round_up(B, TB)

    # Independent row sub-chunks inside each tile (hide serial layer chain).
    sub_rows = 256 if TB >= 512 else TB
    n_sub = TB // sub_rows

    # ---- operand prep ------------------------------------------------------
    in_dim_p = _round_up(in_dim, 8)
    x_p = jnp.pad(x, ((0, B_pad - B), (0, in_dim_p - in_dim)))
    x_bf16 = x_p.astype(jnp.bfloat16)

    kernel = functools.partial(
        mlp_kernel,
        in_dim=in_dim_p, n_layers=n_layers, n_sub=n_sub, sub_rows=sub_rows)

    out = pl.pallas_call(
        kernel,
        out_shape=jax.ShapeDtypeStruct((B_pad, OUT_PAD), jnp.float32),
        grid=(B_pad // TB,),
        in_specs=[
            pl.BlockSpec((TB, in_dim_p), lambda i: (i, 0)),          # streamed x
            pl.BlockSpec(tuple(w_slab.shape), lambda i: (0, 0, 0)),  # VMEM-resident
            pl.BlockSpec(tuple(b_slab.shape), lambda i: (0, 0, 0)),  # VMEM-resident
        ],
        out_specs=pl.BlockSpec((TB, OUT_PAD), lambda i: (i, 0)),
        compiler_params=pltpu.CompilerParams(
            dimension_semantics=("parallel",)),   # megacore sharding on v7x
    )(x_bf16, w_slab, b_slab)

    # Strip batch padding and the 1 -> OUT_PAD lane padding of the last layer.
    return out[:B, :1]


def init_linear(key, fan_in, fan_out):
    """Deterministic init mimicking torch.nn.Linear default (+-1/sqrt(fan_in))."""
    kw, kb = jax.random.split(key)
    bound = 1.0 / math.sqrt(fan_in)
    w = jax.random.uniform(kw, (fan_in, fan_out), jnp.float32, -bound, bound)
    b = jax.random.uniform(kb, (1, fan_out), jnp.float32, -bound, bound)
    return w, b


def reference_forward(x, params):
    h = x
    for i, (w, b) in enumerate(params):
        h = h @ w + b
        if i < len(params) - 1:
            h = jnp.maximum(h, 0.0)
    return h


if __name__ == "__main__":
    input_dim = 32
    batch = 8
    layer_dims = [input_dim, 128, 64, 32, 16, 8, 1]

    key = jax.random.PRNGKey(0)
    keys = jax.random.split(key, len(layer_dims))  # last key for x
    params = [
        init_linear(keys[i], layer_dims[i], layer_dims[i + 1])
        for i in range(len(layer_dims) - 1)
    ]
    x = jax.random.normal(keys[-1], (batch, input_dim), jnp.float32)

    w_slab, b_slab = pack_params(params)
    out = neural_network_forward(x, w_slab, b_slab)
    out = jax.block_until_ready(out)

    ref = reference_forward(x, params)
    assert out.shape == (batch, 1), out.shape
    # bf16 matmul operands with f32 accumulation -> slightly loose tolerance.
    assert jnp.allclose(out, ref, atol=5e-2, rtol=5e-2), (
        f"max err = {jnp.max(jnp.abs(out - ref))}")

    print("KERNEL_OK")
</pallas_src>

<mosaic_0001>
module attributes {stable_mosaic.version = 11 : i64} {
  func.func @mlp_kernel(%arg0: i32, %arg1: memref<16x32xbf16, #tpu.memory_space<vmem>>, %arg2: memref<6x128x128xbf16, #tpu.memory_space<vmem>>, %arg3: memref<6x1x128xf32, #tpu.memory_space<vmem>>, %arg4: memref<16x8xf32, #tpu.memory_space<vmem>>) attributes {dimension_semantics = [#tpu.dimension_semantics<parallel>], iteration_bounds = array<i64: 1>, scalar_prefetch = 0 : i64, scratch_operands = 0 : i64, tpu.core_type = #tpu.core_type<tc>, window_params = [{transform_indices = @transform_0, window_bounds = array<i64: 16, 32>}, {pipeline_mode = #tpu.pipeline_mode<synchronous>, transform_indices = @transform_1, window_bounds = array<i64: 6, 128, 128>}, {pipeline_mode = #tpu.pipeline_mode<synchronous>, transform_indices = @transform_2, window_bounds = array<i64: 6, 1, 128>}, {transform_indices = @transform_3, window_bounds = array<i64: 16, 8>}]} {
    %c0 = arith.constant 0 : index
    %c0_0 = arith.constant 0 : index
    %0 = vector.load %arg1[%c0, %c0_0] : memref<16x32xbf16, #tpu.memory_space<vmem>>, vector<16x32xbf16>
    %c0_1 = arith.constant 0 : index
    %c0_2 = arith.constant 0 : index
    %c0_3 = arith.constant 0 : index
    %1 = vector.load %arg2[%c0_1, %c0_2, %c0_3] : memref<6x128x128xbf16, #tpu.memory_space<vmem>>, vector<1x128x128xbf16>
    %2 = vector.shape_cast %1 : vector<1x128x128xbf16> to vector<128x128xbf16>
    %3 = vector.extract_strided_slice %2 {offsets = [0, 0], sizes = [32, 128], strides = [1, 1]} : vector<128x128xbf16> to vector<32x128xbf16>
    %cst = arith.constant dense<0.000000e+00> : vector<16x128xf32>
    %4 = tpu.matmul %0, %3, %cst {dimension_numbers = #tpu.dot_dimension_numbers<[1], [0], [0], [1], [0, 0, 1, 1], [], []>} : vector<16x32xbf16>, vector<32x128xbf16>, vector<16x128xf32> -> vector<16x128xf32>
    %c0_4 = arith.constant 0 : index
    %c0_5 = arith.constant 0 : index
    %c0_6 = arith.constant 0 : index
    %5 = vector.load %arg3[%c0_4, %c0_5, %c0_6] : memref<6x1x128xf32, #tpu.memory_space<vmem>>, vector<1x1x128xf32>
    %6 = vector.shape_cast %5 : vector<1x1x128xf32> to vector<1x128xf32>
    %7 = vector.broadcast %6 : vector<1x128xf32> to vector<16x128xf32>
    %8 = arith.addf %4, %7 : vector<16x128xf32>
    %cst_7 = arith.constant 0.000000e+00 : f32
    %9 = vector.broadcast %cst_7 : f32 to vector<16x128xf32>
    %10 = arith.maximumf %8, %9 : vector<16x128xf32>
    %11 = arith.truncf %10 : vector<16x128xf32> to vector<16x128xbf16>
    %c1 = arith.constant 1 : index
    %c0_8 = arith.constant 0 : index
    %c0_9 = arith.constant 0 : index
    %12 = vector.load %arg2[%c1, %c0_8, %c0_9] : memref<6x128x128xbf16, #tpu.memory_space<vmem>>, vector<1x128x128xbf16>
    %13 = vector.shape_cast %12 : vector<1x128x128xbf16> to vector<128x128xbf16>
    %cst_10 = arith.constant dense<0.000000e+00> : vector<16x128xf32>
    %14 = tpu.matmul %11, %13, %cst_10 {dimension_numbers = #tpu.dot_dimension_numbers<[1], [0], [0], [1], [0, 0, 1, 1], [], []>} : vector<16x128xbf16>, vector<128x128xbf16>, vector<16x128xf32> -> vector<16x128xf32>
    %c1_11 = arith.constant 1 : index
    %c0_12 = arith.constant 0 : index
    %c0_13 = arith.constant 0 : index
    %15 = vector.load %arg3[%c1_11, %c0_12, %c0_13] : memref<6x1x128xf32, #tpu.memory_space<vmem>>, vector<1x1x128xf32>
    %16 = vector.shape_cast %15 : vector<1x1x128xf32> to vector<1x128xf32>
    %17 = vector.broadcast %16 : vector<1x128xf32> to vector<16x128xf32>
    %18 = arith.addf %14, %17 : vector<16x128xf32>
    %cst_14 = arith.constant 0.000000e+00 : f32
    %19 = vector.broadcast %cst_14 : f32 to vector<16x128xf32>
    %20 = arith.maximumf %18, %19 : vector<16x128xf32>
    %21 = arith.truncf %20 : vector<16x128xf32> to vector<16x128xbf16>
    %c2 = arith.constant 2 : index
    %c0_15 = arith.constant 0 : index
    %c0_16 = arith.constant 0 : index
    %22 = vector.load %arg2[%c2, %c0_15, %c0_16] : memref<6x128x128xbf16, #tpu.memory_space<vmem>>, vector<1x128x128xbf16>
    %23 = vector.shape_cast %22 : vector<1x128x128xbf16> to vector<128x128xbf16>
    %cst_17 = arith.constant dense<0.000000e+00> : vector<16x128xf32>
    %24 = tpu.matmul %21, %23, %cst_17 {dimension_numbers = #tpu.dot_dimension_numbers<[1], [0], [0], [1], [0, 0, 1, 1], [], []>} : vector<16x128xbf16>, vector<128x128xbf16>, vector<16x128xf32> -> vector<16x128xf32>
    %c2_18 = arith.constant 2 : index
    %c0_19 = arith.constant 0 : index
    %c0_20 = arith.constant 0 : index
    %25 = vector.load %arg3[%c2_18, %c0_19, %c0_20] : memref<6x1x128xf32, #tpu.memory_space<vmem>>, vector<1x1x128xf32>
    %26 = vector.shape_cast %25 : vector<1x1x128xf32> to vector<1x128xf32>
    %27 = vector.broadcast %26 : vector<1x128xf32> to vector<16x128xf32>
    %28 = arith.addf %24, %27 : vector<16x128xf32>
    %cst_21 = arith.constant 0.000000e+00 : f32
    %29 = vector.broadcast %cst_21 : f32 to vector<16x128xf32>
    %30 = arith.maximumf %28, %29 : vector<16x128xf32>
    %31 = arith.truncf %30 : vector<16x128xf32> to vector<16x128xbf16>
    %c3 = arith.constant 3 : index
    %c0_22 = arith.constant 0 : index
    %c0_23 = arith.constant 0 : index
    %32 = vector.load %arg2[%c3, %c0_22, %c0_23] : memref<6x128x128xbf16, #tpu.memory_space<vmem>>, vector<1x128x128xbf16>
    %33 = vector.shape_cast %32 : vector<1x128x128xbf16> to vector<128x128xbf16>
    %cst_24 = arith.constant dense<0.000000e+00> : vector<16x128xf32>
    %34 = tpu.matmul %31, %33, %cst_24 {dimension_numbers = #tpu.dot_dimension_numbers<[1], [0], [0], [1], [0, 0, 1, 1], [], []>} : vector<16x128xbf16>, vector<128x128xbf16>, vector<16x128xf32> -> vector<16x128xf32>
    %c3_25 = arith.constant 3 : index
    %c0_26 = arith.constant 0 : index
    %c0_27 = arith.constant 0 : index
    %35 = vector.load %arg3[%c3_25, %c0_26, %c0_27] : memref<6x1x128xf32, #tpu.memory_space<vmem>>, vector<1x1x128xf32>
    %36 = vector.shape_cast %35 : vector<1x1x128xf32> to vector<1x128xf32>
    %37 = vector.broadcast %36 : vector<1x128xf32> to vector<16x128xf32>
    %38 = arith.addf %34, %37 : vector<16x128xf32>
    %cst_28 = arith.constant 0.000000e+00 : f32
    %39 = vector.broadcast %cst_28 : f32 to vector<16x128xf32>
    %40 = arith.maximumf %38, %39 : vector<16x128xf32>
    %41 = arith.truncf %40 : vector<16x128xf32> to vector<16x128xbf16>
    %c4 = arith.constant 4 : index
    %c0_29 = arith.constant 0 : index
    %c0_30 = arith.constant 0 : index
    %42 = vector.load %arg2[%c4, %c0_29, %c0_30] : memref<6x128x128xbf16, #tpu.memory_space<vmem>>, vector<1x128x128xbf16>
    %43 = vector.shape_cast %42 : vector<1x128x128xbf16> to vector<128x128xbf16>
    %cst_31 = arith.constant dense<0.000000e+00> : vector<16x128xf32>
    %44 = tpu.matmul %41, %43, %cst_31 {dimension_numbers = #tpu.dot_dimension_numbers<[1], [0], [0], [1], [0, 0, 1, 1], [], []>} : vector<16x128xbf16>, vector<128x128xbf16>, vector<16x128xf32> -> vector<16x128xf32>
    %c4_32 = arith.constant 4 : index
    %c0_33 = arith.constant 0 : index
    %c0_34 = arith.constant 0 : index
    %45 = vector.load %arg3[%c4_32, %c0_33, %c0_34] : memref<6x1x128xf32, #tpu.memory_space<vmem>>, vector<1x1x128xf32>
    %46 = vector.shape_cast %45 : vector<1x1x128xf32> to vector<1x128xf32>
    %47 = vector.broadcast %46 : vector<1x128xf32> to vector<16x128xf32>
    %48 = arith.addf %44, %47 : vector<16x128xf32>
    %cst_35 = arith.constant 0.000000e+00 : f32
    %49 = vector.broadcast %cst_35 : f32 to vector<16x128xf32>
    %50 = arith.maximumf %48, %49 : vector<16x128xf32>
    %51 = arith.truncf %50 : vector<16x128xf32> to vector<16x128xbf16>
    %c5 = arith.constant 5 : index
    %c0_36 = arith.constant 0 : index
    %c0_37 = arith.constant 0 : index
    %52 = vector.load %arg2[%c5, %c0_36, %c0_37] : memref<6x128x128xbf16, #tpu.memory_space<vmem>>, vector<1x128x128xbf16>
    %53 = vector.shape_cast %52 : vector<1x128x128xbf16> to vector<128x128xbf16>
    %cst_38 = arith.constant dense<0.000000e+00> : vector<16x128xf32>
    %54 = tpu.matmul %51, %53, %cst_38 {dimension_numbers = #tpu.dot_dimension_numbers<[1], [0], [0], [1], [0, 0, 1, 1], [], []>} : vector<16x128xbf16>, vector<128x128xbf16>, vector<16x128xf32> -> vector<16x128xf32>
    %c5_39 = arith.constant 5 : index
    %c0_40 = arith.constant 0 : index
    %c0_41 = arith.constant 0 : index
    %55 = vector.load %arg3[%c5_39, %c0_40, %c0_41] : memref<6x1x128xf32, #tpu.memory_space<vmem>>, vector<1x1x128xf32>
    %56 = vector.shape_cast %55 : vector<1x1x128xf32> to vector<1x128xf32>
    %57 = vector.broadcast %56 : vector<1x128xf32> to vector<16x128xf32>
    %58 = arith.addf %54, %57 : vector<16x128xf32>
    %59 = vector.extract_strided_slice %58 {offsets = [0, 0], sizes = [16, 8], strides = [1, 1]} : vector<16x128xf32> to vector<16x8xf32>
    %c0_42 = arith.constant 0 : index
    %c0_43 = arith.constant 0 : index
    %60 = vector.load %arg4[%c0_42, %c0_43] : memref<16x8xf32, #tpu.memory_space<vmem>>, vector<16x8xf32>
    tpu.vector_store %arg4[%c0_42, %c0_43], %59 {strides = array<i32>} : memref<16x8xf32, #tpu.memory_space<vmem>>, vector<16x8xf32>,
    return
  }
  func.func @transform_0(%arg0: i32) -> (i32, i32) {
    %c0_i32 = arith.constant 0 : i32
    %c0_i32_0 = arith.constant 0 : i32
    return %arg0, %c0_i32 : i32, i32
  }
  func.func @transform_1(%arg0: i32) -> (i32, i32, i32) {
    %c0_i32 = arith.constant 0 : i32
    %c0_i32_0 = arith.constant 0 : i32
    %c0_i32_1 = arith.constant 0 : i32
    %c0_i32_2 = arith.constant 0 : i32
    return %c0_i32, %c0_i32_0, %c0_i32_1 : i32, i32, i32
  }
  func.func @transform_2(%arg0: i32) -> (i32, i32, i32) {
    %c0_i32 = arith.constant 0 : i32
    %c0_i32_0 = arith.constant 0 : i32
    %c0_i32_1 = arith.constant 0 : i32
    %c0_i32_2 = arith.constant 0 : i32
    return %c0_i32, %c0_i32_0, %c0_i32_1 : i32, i32, i32
  }
  func.func @transform_3(%arg0: i32) -> (i32, i32) {
    %c0_i32 = arith.constant 0 : i32
    %c0_i32_0 = arith.constant 0 : i32
    return %arg0, %c0_i32 : i32, i32
  }
}

</mosaic_0001>

<llo_original>
// kernel: tpu_custom_call.1
$region0: #{tpu_custom_call.1}
  #allocation0 [shape = 'u32[]', space=smem, size = 0x4, offset = 0x4, fixed_abs, tag = 'smem constant byte address 0x4 - core index']
  #allocation1 [shape = 'u32[144,128]{1,0:T(1,128)}', space=vmem, size = 0x12000, scoped, tag = 'internal scratch']
  %s0 = inlined_call_operand.hbm [shape: bf16[16,32], index: 0, kind: input, shape index: {}]
  %s1 = inlined_call_operand.hbm [shape: bf16[6,128,128], index: 1, kind: input, shape index: {}]
  %s2 = inlined_call_operand.hbm [shape: f32[6,1,128], index: 2, kind: input, shape index: {}]
  %s3 = inlined_call_operand.vmem [shape: f32[16,8], index: 3, kind: output, shape index: {}]
  %s4 = sld [smem:[#allocation0]]
  $region34: #{tpu_custom_call.1} parent=0
    _
  %s6 = ssub.s32 1, %s4
  %s7 = scalar_select 0, %s6, %s4
  $region1: #{tpu_custom_call.1} parent=0
    #allocation2 [shape = 'u8[4096]{0}', space=vmem, size = 0x1000, scoped, tag = 'input window, operand 0, single buffered']
    #allocation3 [shape = 's32[1]{0}', space=sflag, size = 0x4, scoped, tag = 'scoped memory for tpu_custom_call.1']
    #allocation4 [shape = 'u8[196608]{0}', space=vmem, size = 0x30000, scoped, tag = 'input window, operand 1, single buffered']
    #allocation5 [shape = 's32[1]{0}', space=sflag, size = 0x4, scoped, tag = 'scoped memory for tpu_custom_call.1']
    #allocation6 [shape = 'u8[3072]{0}', space=vmem, size = 0xc00, scoped, tag = 'input window, operand 2, single buffered']
    %8 = vsyncpa [#allocation3], 0
    %9 = vsyncpa [#allocation5], 0
    // Predicated region
    $region2: #{tpu_custom_call.1} parent=1 // pred_check
      _
    $region3: #{tpu_custom_call.1} parent=1 // pred_check_branch
      %11 = sbr.rel (0) target = $region5
    $region4: #{tpu_custom_call.1} parent=1 // pred_region
      %s13 = ssub.s32 128, 128
      %14 = vsyncadd [#allocation3], %s13
      %s15 = sshll.u32 [#allocation2], 4
      %s16 = int_to_ptr.vmem [resolvable:$true] %s15
      %21 = dma.hbm_to_vmem [thread:$0]  %s0, 128, %s16, [#allocation3], 64, 64, 4
    $region5: #{tpu_custom_call.1} parent=1 // pred_fallthru
      _
    // Predicated region
    $region6: #{tpu_custom_call.1} parent=1 // pred_check
      _
    $region7: #{tpu_custom_call.1} parent=1 // pred_check_branch
      %23 = sbr.rel (0) target = $region9
    $region8: #{tpu_custom_call.1} parent=1 // pred_region
      %s25 = ssub.s32 6144, 6144
      %26 = vsyncadd [#allocation5], %s25
      %s27 = sshll.u32 [#allocation4], 4
      %s28 = int_to_ptr.vmem [resolvable:$true] %s27
      %33 = dma.hbm_to_vmem [thread:$0]  %s1, 6144, %s28, [#allocation5], 64, 64, 4
    $region9: #{tpu_custom_call.1} parent=1 // pred_fallthru
      _
    // Predicated region
    $region10: #{tpu_custom_call.1} parent=1 // pred_check
      _
    $region11: #{tpu_custom_call.1} parent=1 // pred_check_branch
      %35 = sbr.rel (0) target = $region13
    $region12: #{tpu_custom_call.1} parent=1 // pred_region
      %s37 = ssub.s32 96, 96
      %38 = vsyncadd [#allocation5], %s37
      %s39 = sshll.u32 [#allocation6], 4
      %s40 = int_to_ptr.vmem [resolvable:$true] %s39
      %45 = dma.hbm_to_vmem [thread:$0]  %s2, 96, %s40, [#allocation5], 16, 16, 1
    $region13: #{tpu_custom_call.1} parent=1 // pred_fallthru
      _
    // Predicated region
    $region14: #{tpu_custom_call.1} parent=1 // pred_check
      _
    $region15: #{tpu_custom_call.1} parent=1 // pred_check_branch
      %47 = sbr.rel (0) target = $region17
    $region16: #{tpu_custom_call.1} parent=1 // pred_region
      %48 = dma.done [#allocation3], 128
    $region17: #{tpu_custom_call.1} parent=1 // pred_fallthru
      _
    // Predicated region
    $region18: #{tpu_custom_call.1} parent=1 // pred_check
      _
    $region19: #{tpu_custom_call.1} parent=1 // pred_check_branch
      %50 = sbr.rel (0) target = $region21
    $region20: #{tpu_custom_call.1} parent=1 // pred_region
      %51 = dma.done [#allocation5], 6144
    $region21: #{tpu_custom_call.1} parent=1 // pred_fallthru
      _
    // Predicated region
    $region22: #{tpu_custom_call.1} parent=1 // pred_check
      _
    $region23: #{tpu_custom_call.1} parent=1 // pred_check_branch
      %53 = sbr.rel (0) target = $region25
    $region24: #{tpu_custom_call.1} parent=1 // pred_region
      %54 = dma.done [#allocation5], 96
    $region25: #{tpu_custom_call.1} parent=1 // pred_fallthru
      _
    %v56 = vld [vmem:[#allocation2] sm:$0xf]
    %v57 = vld [vmem:[#allocation2 + $0x4] sm:$0xf]
    %v58 = vld [vmem:[#allocation4] sm:$0xf]
    %v59 = vld [vmem:[#allocation4 + $0x4] sm:$0xf]
    %v60 = vld [vmem:[#allocation4 + $0x8] sm:$0xf]
    %v61 = vld [vmem:[#allocation4 + $0xc] sm:$0xf]
    %v62 = vld [vmem:[#allocation6] sm:$0x1]
    %v64 = vlaneseq
    %v65 = vshrl.u32 %v64, 7
    %v66 = vsub.s32 0, %v65
    %v67 = vrot.slane %v62, %v66
    %v71 = vunpack.c.l.b16 %v56
    %v72 = vunpack.c.l.b16 %v57
    %v73 = vpack.c.b16 %v72, %v71
    %v78 = vunpack.c.l.b16 %v58
    %v79 = vunpack.c.l.b16 %v59
    %v80 = vunpack.c.l.b16 %v60
    %v81 = vunpack.c.l.b16 %v61
    %v82 = vpack.c.b16 %v79, %v78
    %v83 = vpack.c.b16 %v81, %v80
    %vm86 = vcmask 261120
    %v88 = vsel %vm86, %v73, 0
    %90 = vmatprep.subr.bf16.mxu0 0
    %91 = vmatpush1.bf16.msra.mxu0 0
    %92 = vmatprep.subr.bf16.mxu0 0
    %93 = vmatpush1.bf16.msra.mxu0 0
    %94 = vmatprep.subr.bf16.mxu0 0
    %95 = vmatpush1.bf16.msra.mxu0 0
    %96 = vmatprep.subr.bf16.mxu0 0
    %97 = vmatpush1.bf16.msra.mxu0 0
    %98 = vmatprep.subr.bf16.mxu0 0
    %99 = vmatpush1.bf16.msra.mxu0 0
    %100 = vmatprep.subr.bf16.mxu0 0
    %101 = vmatpush1.bf16.msra.mxu0 0
    %102 = vmatprep.subr.bf16.mxu0 0
    %103 = vmatpush1.bf16.msra.mxu0 %v83
    %104 = vmatprep.subr.bf16.mxu0 0
    %105 = vmatpush1.bf16.msra.mxu0 %v82
    %106 = vmatprep.subr.bf16.mxu0 0
    %107 = vmatpush2.bf16.msra.mxu0 0
    %108 = vmatprep.subr.bf16.mxu0 0
    %109 = vmatpush2.bf16.msra.mxu0 0
    %110 = vmatprep.subr.bf16.mxu0 0
    %111 = vmatpush2.bf16.msra.mxu0 0
    %112 = vmatprep.subr.bf16.mxu0 0
    %113 = vmatpush2.bf16.msra.mxu0 0
    %114 = vmatprep.subr.bf16.mxu0 0
    %115 = vmatpush2.bf16.msra.mxu0 0
    %116 = vmatprep.subr.bf16.mxu0 0
    %117 = vmatpush2.bf16.msra.mxu0 0
    %118 = vmatprep.subr.bf16.mxu0 0
    %119 = vmatpush2.bf16.msra.mxu0 0
    %120 = vmatprep.subr.bf16.mxu0 0
    %121 = vmatpush2.bf16.msra.mxu0 0
    %122 = vmatprep.mubr.bf16.mxu0 0
    %123 = vmatmul.mubr.bf16.gmra.mxu0 %v88
    %v124 = vpop.f32.mrf.mxu0
    %v125 = vadd.f32 %v67, %v124
    %v126 = vpop.f32.mrf.mxu0
    %v127 = vpop.f32.mrf.mxu0
    %v128 = vadd.f32 %v67, %v127
    %v129 = vpop.f32.mrf.mxu0
    %130 = vdwg.mxu0
    %v131 = vmax.f32 %v125, 0.0
    %v132 = vmax.f32 %v128, 0.0
    %v133 = vpack.c.bf16 %v132, %v131
    %s134 = scalar_lea.vmem [#allocation4], 64
    %v135 = vld [vmem:[%s134] sm:$0xf]
    %v136 = vld [vmem:[%s134 + $0x4] sm:$0xf]
    %v137 = vld [vmem:[%s134 + $0x8] sm:$0xf]
    %v138 = vld [vmem:[%s134 + $0xc] sm:$0xf]
    %v139 = vld [vmem:[%s134 + $0x10] sm:$0xf]
    %v140 = vld [vmem:[%s134 + $0x14] sm:$0xf]
    %v141 = vld [vmem:[%s134 + $0x18] sm:$0xf]
    %v142 = vld [vmem:[%s134 + $0x1c] sm:$0xf]
    %v143 = vld [vmem:[%s134 + $0x20] sm:$0xf]
    %v144 = vld [vmem:[%s134 + $0x24] sm:$0xf]
    %v145 = vld [vmem:[%s134 + $0x28] sm:$0xf]
    %v146 = vld [vmem:[%s134 + $0x2c] sm:$0xf]
    %v147 = vld [vmem:[%s134 + $0x30] sm:$0xf]
    %v148 = vld [vmem:[%s134 + $0x34] sm:$0xf]
    %v149 = vld [vmem:[%s134 + $0x38] sm:$0xf]
    %v150 = vld [vmem:[%s134 + $0x3c] sm:$0xf]
    %s151 = scalar_lea.vmem [#allocation6], 1
    %v152 = vld [vmem:[%s151] sm:$0x1]
    %v154 = vlaneseq
    %v155 = vshrl.u32 %v154, 7
    %v156 = vsub.s32 0, %v155
    %v157 = vrot.slane %v152, %v156
    %v175 = vunpack.c.l.b16 %v135
    %v176 = vunpack.c.l.b16 %v136
    %v177 = vunpack.c.l.b16 %v137
    %v178 = vunpack.c.l.b16 %v138
    %v179 = vunpack.c.l.b16 %v139
    %v180 = vunpack.c.l.b16 %v140
    %v181 = vunpack.c.l.b16 %v141
    %v182 = vunpack.c.l.b16 %v142
    %v183 = vunpack.c.l.b16 %v143
    %v184 = vunpack.c.l.b16 %v144
    %v185 = vunpack.c.l.b16 %v145
    %v186 = vunpack.c.l.b16 %v146
    %v187 = vunpack.c.l.b16 %v147
    %v188 = vunpack.c.l.b16 %v148
    %v189 = vunpack.c.l.b16 %v149
    %v190 = vunpack.c.l.b16 %v150
    %v191 = vpack.c.b16 %v176, %v175
    %v192 = vpack.c.b16 %v178, %v177
    %v193 = vpack.c.b16 %v180, %v179
    %v194 = vpack.c.b16 %v182, %v181
    %v195 = vpack.c.b16 %v184, %v183
    %v196 = vpack.c.b16 %v186, %v185
    %v197 = vpack.c.b16 %v188, %v187
    %v198 = vpack.c.b16 %v190, %v189
    %207 = vmatprep.subr.bf16.mxu0 0
    %208 = vmatpush1.bf16.msra.mxu0 %v198
    %209 = vmatprep.subr.bf16.mxu0 0
    %210 = vmatpush1.bf16.msra.mxu0 %v197
    %211 = vmatprep.subr.bf16.mxu0 0
    %212 = vmatpush1.bf16.msra.mxu0 %v196
    %213 = vmatprep.subr.bf16.mxu0 0
    %214 = vmatpush1.bf16.msra.mxu0 %v195
    %215 = vmatprep.subr.bf16.mxu0 0
    %216 = vmatpush1.bf16.msra.mxu0 %v194
    %217 = vmatprep.subr.bf16.mxu0 0
    %218 = vmatpush1.bf16.msra.mxu0 %v193
    %219 = vmatprep.subr.bf16.mxu0 0
    %220 = vmatpush1.bf16.msra.mxu0 %v192
    %221 = vmatprep.subr.bf16.mxu0 0
    %222 = vmatpush1.bf16.msra.mxu0 %v191
    %223 = vmatprep.subr.bf16.mxu0 0
    %224 = vmatpush2.bf16.msra.mxu0 0
    %225 = vmatprep.subr.bf16.mxu0 0
    %226 = vmatpush2.bf16.msra.mxu0 0
    %227 = vmatprep.subr.bf16.mxu0 0
    %228 = vmatpush2.bf16.msra.mxu0 0
    %229 = vmatprep.subr.bf16.mxu0 0
    %230 = vmatpush2.bf16.msra.mxu0 0
    %231 = vmatprep.subr.bf16.mxu0 0
    %232 = vmatpush2.bf16.msra.mxu0 0
    %233 = vmatprep.subr.bf16.mxu0 0
    %234 = vmatpush2.bf16.msra.mxu0 0
    %235 = vmatprep.subr.bf16.mxu0 0
    %236 = vmatpush2.bf16.msra.mxu0 0
    %237 = vmatprep.subr.bf16.mxu0 0
    %238 = vmatpush2.bf16.msra.mxu0 0
    %239 = vmatprep.mubr.bf16.mxu0 0
    %240 = vmatmul.mubr.bf16.gmra.mxu0 %v133
    %v241 = vpop.f32.mrf.mxu0
    %v242 = vadd.f32 %v157, %v241
    %v243 = vpop.f32.mrf.mxu0
    %v244 = vpop.f32.mrf.mxu0
    %v245 = vadd.f32 %v157, %v244
    %v246 = vpop.f32.mrf.mxu0
    %247 = vdwg.mxu0
    %v248 = vmax.f32 %v242, 0.0
    %v249 = vmax.f32 %v245, 0.0
    %v250 = vpack.c.bf16 %v249, %v248
    %s251 = scalar_lea.vmem [#allocation4], 128
    %v252 = vld [vmem:[%s251] sm:$0xf]
    %v253 = vld [vmem:[%s251 + $0x4] sm:$0xf]
    %v254 = vld [vmem:[%s251 + $0x8] sm:$0xf]
    %v255 = vld [vmem:[%s251 + $0xc] sm:$0xf]
    %v256 = vld [vmem:[%s251 + $0x10] sm:$0xf]
    %v257 = vld [vmem:[%s251 + $0x14] sm:$0xf]
    %v258 = vld [vmem:[%s251 + $0x18] sm:$0xf]
    %v259 = vld [vmem:[%s251 + $0x1c] sm:$0xf]
    %v260 = vld [vmem:[%s251 + $0x20] sm:$0xf]
    %v261 = vld [vmem:[%s251 + $0x24] sm:$0xf]
    %v262 = vld [vmem:[%s251 + $0x28] sm:$0xf]
    %v263 = vld [vmem:[%s251 + $0x2c] sm:$0xf]
    %v264 = vld [vmem:[%s251 + $0x30] sm:$0xf]
    %v265 = vld [vmem:[%s251 + $0x34] sm:$0xf]
    %v266 = vld [vmem:[%s251 + $0x38] sm:$0xf]
    %v267 = vld [vmem:[%s251 + $0x3c] sm:$0xf]
    %s268 = scalar_lea.vmem [#allocation6], 2
    %v269 = vld [vmem:[%s268] sm:$0x1]
    %v271 = vlaneseq
    %v272 = vshrl.u32 %v271, 7
    %v273 = vsub.s32 0, %v272
    %v274 = vrot.slane %v269, %v273
    %v292 = vunpack.c.l.b16 %v252
    %v293 = vunpack.c.l.b16 %v253
    %v294 = vunpack.c.l.b16 %v254
    %v295 = vunpack.c.l.b16 %v255
    %v296 = vunpack.c.l.b16 %v256
    %v297 = vunpack.c.l.b16 %v257
    %v298 = vunpack.c.l.b16 %v258
    %v299 = vunpack.c.l.b16 %v259
    %v300 = vunpack.c.l.b16 %v260
    %v301 = vunpack.c.l.b16 %v261
    %v302 = vunpack.c.l.b16 %v262
    %v303 = vunpack.c.l.b16 %v263
    %v304 = vunpack.c.l.b16 %v264
    %v305 = vunpack.c.l.b16 %v265
    %v306 = vunpack.c.l.b16 %v266
    %v307 = vunpack.c.l.b16 %v267
    %v308 = vpack.c.b16 %v293, %v292
    %v309 = vpack.c.b16 %v295, %v294
    %v310 = vpack.c.b16 %v297, %v296
    %v311 = vpack.c.b16 %v299, %v298
    %v312 = vpack.c.b16 %v301, %v300
    %v313 = vpack.c.b16 %v303, %v302
    %v314 = vpack.c.b16 %v305, %v304
    %v315 = vpack.c.b16 %v307, %v306
    %324 = vmatprep.subr.bf16.mxu0 0
    %325 = vmatpush1.bf16.msra.mxu0 %v315
    %326 = vmatprep.subr.bf16.mxu0 0
    %327 = vmatpush1.bf16.msra.mxu0 %v314
    %328 = vmatprep.subr.bf16.mxu0 0
    %329 = vmatpush1.bf16.msra.mxu0 %v313
    %330 = vmatprep.subr.bf16.mxu0 0
    %331 = vmatpush1.bf16.msra.mxu0 %v312
    %332 = vmatprep.subr.bf16.mxu0 0
    %333 = vmatpush1.bf16.msra.mxu0 %v311
    %334 = vmatprep.subr.bf16.mxu0 0
    %335 = vmatpush1.bf16.msra.mxu0 %v310
    %336 = vmatprep.subr.bf16.mxu0 0
    %337 = vmatpush1.bf16.msra.mxu0 %v309
    %338 = vmatprep.subr.bf16.mxu0 0
    %339 = vmatpush1.bf16.msra.mxu0 %v308
    %340 = vmatprep.subr.bf16.mxu0 0
    %341 = vmatpush2.bf16.msra.mxu0 0
    %342 = vmatprep.subr.bf16.mxu0 0
    %343 = vmatpush2.bf16.msra.mxu0 0
    %344 = vmatprep.subr.bf16.mxu0 0
    %345 = vmatpush2.bf16.msra.mxu0 0
    %346 = vmatprep.subr.bf16.mxu0 0
    %347 = vmatpush2.bf16.msra.mxu0 0
    %348 = vmatprep.subr.bf16.mxu0 0
    %349 = vmatpush2.bf16.msra.mxu0 0
    %350 = vmatprep.subr.bf16.mxu0 0
    %351 = vmatpush2.bf16.msra.mxu0 0
    %352 = vmatprep.subr.bf16.mxu0 0
    %353 = vmatpush2.bf16.msra.mxu0 0
    %354 = vmatprep.subr.bf16.mxu0 0
    %355 = vmatpush2.bf16.msra.mxu0 0
    %356 = vmatprep.mubr.bf16.mxu0 0
    %357 = vmatmul.mubr.bf16.gmra.mxu0 %v250
    %v358 = vpop.f32.mrf.mxu0
    %v359 = vadd.f32 %v274, %v358
    %v360 = vpop.f32.mrf.mxu0
    %v361 = vpop.f32.mrf.mxu0
    %v362 = vadd.f32 %v274, %v361
    %v363 = vpop.f32.mrf.mxu0
    %364 = vdwg.mxu0
    %v365 = vmax.f32 %v359, 0.0
    %v366 = vmax.f32 %v362, 0.0
    %v367 = vpack.c.bf16 %v366, %v365
    %s368 = scalar_lea.vmem [#allocation4], 192
    %v369 = vld [vmem:[%s368] sm:$0xf]
    %v370 = vld [vmem:[%s368 + $0x4] sm:$0xf]
    %v371 = vld [vmem:[%s368 + $0x8] sm:$0xf]
    %v372 = vld [vmem:[%s368 + $0xc] sm:$0xf]
    %v373 = vld [vmem:[%s368 + $0x10] sm:$0xf]
    %v374 = vld [vmem:[%s368 + $0x14] sm:$0xf]
    %v375 = vld [vmem:[%s368 + $0x18] sm:$0xf]
    %v376 = vld [vmem:[%s368 + $0x1c] sm:$0xf]
    %v377 = vld [vmem:[%s368 + $0x20] sm:$0xf]
    %v378 = vld [vmem:[%s368 + $0x24] sm:$0xf]
    %v379 = vld [vmem:[%s368 + $0x28] sm:$0xf]
    %v380 = vld [vmem:[%s368 + $0x2c] sm:$0xf]
    %v381 = vld [vmem:[%s368 + $0x30] sm:$0xf]
    %v382 = vld [vmem:[%s368 + $0x34] sm:$0xf]
    %v383 = vld [vmem:[%s368 + $0x38] sm:$0xf]
    %v384 = vld [vmem:[%s368 + $0x3c] sm:$0xf]
    %s385 = scalar_lea.vmem [#allocation6], 3
    %v386 = vld [vmem:[%s385] sm:$0x1]
    %v388 = vlaneseq
    %v389 = vshrl.u32 %v388, 7
    %v390 = vsub.s32 0, %v389
    %v391 = vrot.slane %v386, %v390
    %v409 = vunpack.c.l.b16 %v369
    %v410 = vunpack.c.l.b16 %v370
    %v411 = vunpack.c.l.b16 %v371
    %v412 = vunpack.c.l.b16 %v372
    %v413 = vunpack.c.l.b16 %v373
    %v414 = vunpack.c.l.b16 %v374
    %v415 = vunpack.c.l.b16 %v375
    %v416 = vunpack.c.l.b16 %v376
    %v417 = vunpack.c.l.b16 %v377
    %v418 = vunpack.c.l.b16 %v378
    %v419 = vunpack.c.l.b16 %v379
    %v420 = vunpack.c.l.b16 %v380
    %v421 = vunpack.c.l.b16 %v381
    %v422 = vunpack.c.l.b16 %v382
    %v423 = vunpack.c.l.b16 %v383
    %v424 = vunpack.c.l.b16 %v384
    %v425 = vpack.c.b16 %v410, %v409
    %v426 = vpack.c.b16 %v412, %v411
    %v427 = vpack.c.b16 %v414, %v413
    %v428 = vpack.c.b16 %v416, %v415
    %v429 = vpack.c.b16 %v418, %v417
    %v430 = vpack.c.b16 %v420, %v419
    %v431 = vpack.c.b16 %v422, %v421
    %v432 = vpack.c.b16 %v424, %v423
    %441 = vmatprep.subr.bf16.mxu0 0
    %442 = vmatpush1.bf16.msra.mxu0 %v432
    %443 = vmatprep.subr.bf16.mxu0 0
    %444 = vmatpush1.bf16.msra.mxu0 %v431
    %445 = vmatprep.subr.bf16.mxu0 0
    %446 = vmatpush1.bf16.msra.mxu0 %v430
    %447 = vmatprep.subr.bf16.mxu0 0
    %448 = vmatpush1.bf16.msra.mxu0 %v429
    %449 = vmatprep.subr.bf16.mxu0 0
    %450 = vmatpush1.bf16.msra.mxu0 %v428
    %451 = vmatprep.subr.bf16.mxu0 0
    %452 = vmatpush1.bf16.msra.mxu0 %v427
    %453 = vmatprep.subr.bf16.mxu0 0
    %454 = vmatpush1.bf16.msra.mxu0 %v426
    %455 = vmatprep.subr.bf16.mxu0 0
    %456 = vmatpush1.bf16.msra.mxu0 %v425
    %457 = vmatprep.subr.bf16.mxu0 0
    %458 = vmatpush2.bf16.msra.mxu0 0
    %459 = vmatprep.subr.bf16.mxu0 0
    %460 = vmatpush2.bf16.msra.mxu0 0
    %461 = vmatprep.subr.bf16.mxu0 0
    %462 = vmatpush2.bf16.msra.mxu0 0
    %463 = vmatprep.subr.bf16.mxu0 0
    %464 = vmatpush2.bf16.msra.mxu0 0
    %465 = vmatprep.subr.bf16.mxu0 0
    %466 = vmatpush2.bf16.msra.mxu0 0
    %467 = vmatprep.subr.bf16.mxu0 0
    %468 = vmatpush2.bf16.msra.mxu0 0
    %469 = vmatprep.subr.bf16.mxu0 0
    %470 = vmatpush2.bf16.msra.mxu0 0
    %471 = vmatprep.subr.bf16.mxu0 0
    %472 = vmatpush2.bf16.msra.mxu0 0
    %473 = vmatprep.mubr.bf16.mxu0 0
    %474 = vmatmul.mubr.bf16.gmra.mxu0 %v367
    %v475 = vpop.f32.mrf.mxu0
    %v476 = vadd.f32 %v391, %v475
    %v477 = vpop.f32.mrf.mxu0
    %v478 = vpop.f32.mrf.mxu0
    %v479 = vadd.f32 %v391, %v478
    %v480 = vpop.f32.mrf.mxu0
    %481 = vdwg.mxu0
    %v482 = vmax.f32 %v476, 0.0
    %v483 = vmax.f32 %v479, 0.0
    %v484 = vpack.c.bf16 %v483, %v482
    %s485 = scalar_lea.vmem [#allocation4], 256
    %v486 = vld [vmem:[%s485] sm:$0xf]
    %v487 = vld [vmem:[%s485 + $0x4] sm:$0xf]
    %v488 = vld [vmem:[%s485 + $0x8] sm:$0xf]
    %v489 = vld [vmem:[%s485 + $0xc] sm:$0xf]
    %v490 = vld [vmem:[%s485 + $0x10] sm:$0xf]
    %v491 = vld [vmem:[%s485 + $0x14] sm:$0xf]
    %v492 = vld [vmem:[%s485 + $0x18] sm:$0xf]
    %v493 = vld [vmem:[%s485 + $0x1c] sm:$0xf]
    %v494 = vld [vmem:[%s485 + $0x20] sm:$0xf]
    %v495 = vld [vmem:[%s485 + $0x24] sm:$0xf]
    %v496 = vld [vmem:[%s485 + $0x28] sm:$0xf]
    %v497 = vld [vmem:[%s485 + $0x2c] sm:$0xf]
    %v498 = vld [vmem:[%s485 + $0x30] sm:$0xf]
    %v499 = vld [vmem:[%s485 + $0x34] sm:$0xf]
    %v500 = vld [vmem:[%s485 + $0x38] sm:$0xf]
    %v501 = vld [vmem:[%s485 + $0x3c] sm:$0xf]
    %s502 = scalar_lea.vmem [#allocation6], 4
    %v503 = vld [vmem:[%s502] sm:$0x1]
    %v505 = vlaneseq
    %v506 = vshrl.u32 %v505, 7
    %v507 = vsub.s32 0, %v506
    %v508 = vrot.slane %v503, %v507
    %v526 = vunpack.c.l.b16 %v486
    %v527 = vunpack.c.l.b16 %v487
    %v528 = vunpack.c.l.b16 %v488
    %v529 = vunpack.c.l.b16 %v489
    %v530 = vunpack.c.l.b16 %v490
    %v531 = vunpack.c.l.b16 %v491
    %v532 = vunpack.c.l.b16 %v492
    %v533 = vunpack.c.l.b16 %v493
    %v534 = vunpack.c.l.b16 %v494
    %v535 = vunpack.c.l.b16 %v495
    %v536 = vunpack.c.l.b16 %v496
    %v537 = vunpack.c.l.b16 %v497
    %v538 = vunpack.c.l.b16 %v498
    %v539 = vunpack.c.l.b16 %v499
    %v540 = vunpack.c.l.b16 %v500
    %v541 = vunpack.c.l.b16 %v501
    %v542 = vpack.c.b16 %v527, %v526
    %v543 = vpack.c.b16 %v529, %v528
    %v544 = vpack.c.b16 %v531, %v530
    %v545 = vpack.c.b16 %v533, %v532
    %v546 = vpack.c.b16 %v535, %v534
    %v547 = vpack.c.b16 %v537, %v536
    %v548 = vpack.c.b16 %v539, %v538
    %v549 = vpack.c.b16 %v541, %v540
    %558 = vmatprep.subr.bf16.mxu0 0
    %559 = vmatpush1.bf16.msra.mxu0 %v549
    %560 = vmatprep.subr.bf16.mxu0 0
    %561 = vmatpush1.bf16.msra.mxu0 %v548
    %562 = vmatprep.subr.bf16.mxu0 0
    %563 = vmatpush1.bf16.msra.mxu0 %v547
    %564 = vmatprep.subr.bf16.mxu0 0
    %565 = vmatpush1.bf16.msra.mxu0 %v546
    %566 = vmatprep.subr.bf16.mxu0 0
    %567 = vmatpush1.bf16.msra.mxu0 %v545
    %568 = vmatprep.subr.bf16.mxu0 0
    %569 = vmatpush1.bf16.msra.mxu0 %v544
    %570 = vmatprep.subr.bf16.mxu0 0
    %571 = vmatpush1.bf16.msra.mxu0 %v543
    %572 = vmatprep.subr.bf16.mxu0 0
    %573 = vmatpush1.bf16.msra.mxu0 %v542
    %574 = vmatprep.subr.bf16.mxu0 0
    %575 = vmatpush2.bf16.msra.mxu0 0
    %576 = vmatprep.subr.bf16.mxu0 0
    %577 = vmatpush2.bf16.msra.mxu0 0
    %578 = vmatprep.subr.bf16.mxu0 0
    %579 = vmatpush2.bf16.msra.mxu0 0
    %580 = vmatprep.subr.bf16.mxu0 0
    %581 = vmatpush2.bf16.msra.mxu0 0
    %582 = vmatprep.subr.bf16.mxu0 0
    %583 = vmatpush2.bf16.msra.mxu0 0
    %584 = vmatprep.subr.bf16.mxu0 0
    %585 = vmatpush2.bf16.msra.mxu0 0
    %586 = vmatprep.subr.bf16.mxu0 0
    %587 = vmatpush2.bf16.msra.mxu0 0
    %588 = vmatprep.subr.bf16.mxu0 0
    %589 = vmatpush2.bf16.msra.mxu0 0
    %590 = vmatprep.mubr.bf16.mxu0 0
    %591 = vmatmul.mubr.bf16.gmra.mxu0 %v484
    %v592 = vpop.f32.mrf.mxu0
    %v593 = vadd.f32 %v508, %v592
    %v594 = vpop.f32.mrf.mxu0
    %v595 = vpop.f32.mrf.mxu0
    %v596 = vadd.f32 %v508, %v595
    %v597 = vpop.f32.mrf.mxu0
    %598 = vdwg.mxu0
    %v599 = vmax.f32 %v593, 0.0
    %v600 = vmax.f32 %v596, 0.0
    %v601 = vpack.c.bf16 %v600, %v599
    %s602 = scalar_lea.vmem [#allocation4], 320
    %v603 = vld [vmem:[%s602] sm:$0xf]
    %v604 = vld [vmem:[%s602 + $0x4] sm:$0xf]
    %v605 = vld [vmem:[%s602 + $0x8] sm:$0xf]
    %v606 = vld [vmem:[%s602 + $0xc] sm:$0xf]
    %v607 = vld [vmem:[%s602 + $0x10] sm:$0xf]
    %v608 = vld [vmem:[%s602 + $0x14] sm:$0xf]
    %v609 = vld [vmem:[%s602 + $0x18] sm:$0xf]
    %v610 = vld [vmem:[%s602 + $0x1c] sm:$0xf]
    %v611 = vld [vmem:[%s602 + $0x20] sm:$0xf]
    %v612 = vld [vmem:[%s602 + $0x24] sm:$0xf]
    %v613 = vld [vmem:[%s602 + $0x28] sm:$0xf]
    %v614 = vld [vmem:[%s602 + $0x2c] sm:$0xf]
    %v615 = vld [vmem:[%s602 + $0x30] sm:$0xf]
    %v616 = vld [vmem:[%s602 + $0x34] sm:$0xf]
    %v617 = vld [vmem:[%s602 + $0x38] sm:$0xf]
    %v618 = vld [vmem:[%s602 + $0x3c] sm:$0xf]
    %s619 = scalar_lea.vmem [#allocation6], 5
    %v620 = vld [vmem:[%s619] sm:$0x1]
    %v622 = vlaneseq
    %v623 = vshrl.u32 %v622, 7
    %v624 = vsub.s32 0, %v623
    %v625 = vrot.slane %v620, %v624
    %v643 = vunpack.c.l.b16 %v603
    %v644 = vunpack.c.l.b16 %v604
    %v645 = vunpack.c.l.b16 %v605
    %v646 = vunpack.c.l.b16 %v606
    %v647 = vunpack.c.l.b16 %v607
    %v648 = vunpack.c.l.b16 %v608
    %v649 = vunpack.c.l.b16 %v609
    %v650 = vunpack.c.l.b16 %v610
    %v651 = vunpack.c.l.b16 %v611
    %v652 = vunpack.c.l.b16 %v612
    %v653 = vunpack.c.l.b16 %v613
    %v654 = vunpack.c.l.b16 %v614
    %v655 = vunpack.c.l.b16 %v615
    %v656 = vunpack.c.l.b16 %v616
    %v657 = vunpack.c.l.b16 %v617
    %v658 = vunpack.c.l.b16 %v618
    %v659 = vpack.c.b16 %v644, %v643
    %v660 = vpack.c.b16 %v646, %v645
    %v661 = vpack.c.b16 %v648, %v647
    %v662 = vpack.c.b16 %v650, %v649
    %v663 = vpack.c.b16 %v652, %v651
    %v664 = vpack.c.b16 %v654, %v653
    %v665 = vpack.c.b16 %v656, %v655
    %v666 = vpack.c.b16 %v658, %v657
    %675 = vmatprep.subr.bf16.mxu0 0
    %676 = vmatpush1.bf16.msra.mxu0 %v666
    %677 = vmatprep.subr.bf16.mxu0 0
    %678 = vmatpush1.bf16.msra.mxu0 %v665
    %679 = vmatprep.subr.bf16.mxu0 0
    %680 = vmatpush1.bf16.msra.mxu0 %v664
    %681 = vmatprep.subr.bf16.mxu0 0
    %682 = vmatpush1.bf16.msra.mxu0 %v663
    %683 = vmatprep.subr.bf16.mxu0 0
    %684 = vmatpush1.bf16.msra.mxu0 %v662
    %685 = vmatprep.subr.bf16.mxu0 0
    %686 = vmatpush1.bf16.msra.mxu0 %v661
    %687 = vmatprep.subr.bf16.mxu0 0
    %688 = vmatpush1.bf16.msra.mxu0 %v660
    %689 = vmatprep.subr.bf16.mxu0 0
    %690 = vmatpush1.bf16.msra.mxu0 %v659
    %691 = vmatprep.subr.bf16.mxu0 0
    %692 = vmatpush2.bf16.msra.mxu0 0
    %693 = vmatprep.subr.bf16.mxu0 0
    %694 = vmatpush2.bf16.msra.mxu0 0
    %695 = vmatprep.subr.bf16.mxu0 0
    %696 = vmatpush2.bf16.msra.mxu0 0
    %697 = vmatprep.subr.bf16.mxu0 0
    %698 = vmatpush2.bf16.msra.mxu0 0
    %699 = vmatprep.subr.bf16.mxu0 0
    %700 = vmatpush2.bf16.msra.mxu0 0
    %701 = vmatprep.subr.bf16.mxu0 0
    %702 = vmatpush2.bf16.msra.mxu0 0
    %703 = vmatprep.subr.bf16.mxu0 0
    %704 = vmatpush2.bf16.msra.mxu0 0
    %705 = vmatprep.subr.bf16.mxu0 0
    %706 = vmatpush2.bf16.msra.mxu0 0
    %707 = vmatprep.mubr.bf16.mxu0 0
    %708 = vmatmul.mubr.bf16.gmra.mxu0 %v601
    %v709 = vpop.f32.mrf.mxu0
    %v710 = vadd.f32 %v625, %v709
    %v711 = vpop.f32.mrf.mxu0
    %v712 = vpop.f32.mrf.mxu0
    %v713 = vadd.f32 %v625, %v712
    %v714 = vpop.f32.mrf.mxu0
    %715 = vdwg.mxu0
    %vm716 = vcmask 64512
    %717 = vst.msk [vmem:[%s3] sm:$0xff] %vm716, %v710
    %718 = vst.msk [vmem:[%s3 + $0x8] sm:$0xff] %vm716, %v713
    // Predicated region
    $region26: #{tpu_custom_call.1} parent=1 // pred_check
      _
    $region27: #{tpu_custom_call.1} parent=1 // pred_check_branch
      %720 = sbr.rel (0) target = $region29
    $region28: #{tpu_custom_call.1} parent=1 // pred_region
      _
    $region29: #{tpu_custom_call.1} parent=1 // pred_fallthru
      _
    // Predicated region
    $region30: #{tpu_custom_call.1} parent=1 // pred_check
      _
    $region31: #{tpu_custom_call.1} parent=1 // pred_check_branch
      %722 = sbr.rel (0) target = $region33
    $region32: #{tpu_custom_call.1} parent=1 // pred_region
      _
    $region33: #{tpu_custom_call.1} parent=1 // pred_fallthru
      _
    %723 = vsyncpa [#allocation3], 1
    %724 = vsyncpa [#allocation5], 1

</llo_original>
